<compile_context>
chip_gen: v6e
topology: v6e:2x2x1
jax: 0.10.0
libtpu: 0.0.40
codegen_flags: <defaults>
</compile_context>

<pallas_src>
import functools

import jax
import jax.numpy as jnp
from jax import lax
from jax.experimental import pallas as pl
from jax.experimental.pallas import tpu as pltpu

DROPOUT_RATE = 0.1


# ----------------------------------------------------------------------------
# In-kernel counter-based PRNG (pure jnp -> lowers on TPU and in interpret)
# ----------------------------------------------------------------------------
def _uniform_bits_u32(seed_u32, shape, salt):
    """uint32 uniform bits of 2-D `shape`, keyed by (seed, salt, position)."""
    r = lax.broadcasted_iota(jnp.int32, shape, 0).astype(jnp.uint32)
    c = lax.broadcasted_iota(jnp.int32, shape, 1).astype(jnp.uint32)
    x = r * jnp.uint32(shape[1]) + c
    x = x + seed_u32 * jnp.uint32(2654435761) + jnp.uint32(salt)
    # murmur3-style finalizer (avalanche): wrapping uint32 mul/xor/shift.
    x = x ^ (x >> jnp.uint32(16))
    x = x * jnp.uint32(0x7FEB352D)
    x = x ^ (x >> jnp.uint32(15))
    x = x * jnp.uint32(0x846CA68B)
    x = x ^ (x >> jnp.uint32(16))
    return x


def _apply_dropout(h, bits, keep_threshold, inv_keep):
    """Inverted dropout: keep w.p. (1-p), scale kept units by 1/(1-p)."""
    keep = bits >= jnp.uint32(keep_threshold)      # P(keep) ~= 1 - p
    return jnp.where(keep, h * jnp.float32(inv_keep), jnp.float32(0.0))


def _threshold(dropout_rate):
    # P(drop) = P(bits < T) ~= dropout_rate.
    # TODO(synk): dropout_rate == 1.0 gives keep-prob 2^-32 instead of exactly 0.
    t = int(round(dropout_rate * (2.0 ** 32)))
    return max(0, min(t, 2 ** 32 - 1))


# ----------------------------------------------------------------------------
# Kernels
# ----------------------------------------------------------------------------
def _forward_kernel(seed_ref, x_ref, w1_ref, b1_ref, w2_ref, b2_ref, o_ref,
                    *, keep_threshold, inv_keep):
    """One stochastic pass of Linear -> ReLU -> Dropout -> Linear."""
    x = x_ref[...].astype(jnp.float32)
    h = jnp.dot(x, w1_ref[...], preferred_element_type=jnp.float32) + b1_ref[...]
    h = jnp.maximum(h, 0.0)

    seed = seed_ref[0].astype(jnp.uint32)
    bits = _uniform_bits_u32(seed, h.shape, salt=0)
    h = _apply_dropout(h, bits, keep_threshold, inv_keep)

    y = jnp.dot(h, w2_ref[...], preferred_element_type=jnp.float32) + b2_ref[...]
    o_ref[...] = y.astype(o_ref.dtype)


def _mc_kernel(seed_ref, x_ref, w1_ref, b1_ref, w2_ref, b2_ref, out_ref,
               *, n_samples, batch, d_out, keep_threshold, inv_keep):
    """All n_samples MC-dropout passes in one kernel invocation.

    Deterministic first layer computed once; all samples' masked activations
    batched into a single (n*B, H) block and one MXU matmul; mean / unbiased
    variance accumulated in-register; output packed as [mean | var].
    """
    x = x_ref[...].astype(jnp.float32)
    h = jnp.dot(x, w1_ref[...], preferred_element_type=jnp.float32) + b1_ref[...]
    h = jnp.maximum(h, 0.0)                                    # (B, H)
    hidden = h.shape[1]

    # Bulk dropout-bit draw for every sample at once.
    seed = seed_ref[0].astype(jnp.uint32)
    bits = _uniform_bits_u32(seed, (n_samples * batch, hidden), salt=1)

    # Tile the deterministic activations across samples, then mask+scale.
    h_all = jnp.broadcast_to(h[None, :, :], (n_samples, batch, hidden))
    h_all = h_all.reshape(n_samples * batch, hidden)
    h_all = _apply_dropout(h_all, bits, keep_threshold, inv_keep)

    # One matmul for all samples: (n*B, H) @ (H, Dout).
    y = jnp.dot(h_all, w2_ref[...], preferred_element_type=jnp.float32) + b2_ref[...]

    # Mean over samples (static, sublane-aligned slices when B % 8 == 0).
    total = jnp.zeros((batch, d_out), jnp.float32)
    for s in range(n_samples):
        total = total + y[s * batch:(s + 1) * batch, :]
    mean = total * jnp.float32(1.0 / n_samples)

    # Unbiased variance (torch.var default: correction=1), via squared
    # deviations from the mean -> numerically robust, always >= 0.
    sqdev = jnp.zeros((batch, d_out), jnp.float32)
    for s in range(n_samples):
        d = y[s * batch:(s + 1) * batch, :] - mean
        sqdev = sqdev + d * d
    var = sqdev * jnp.float32(1.0 / (n_samples - 1))

    # Lane-packed single store: [mean | var].
    out_ref[...] = jnp.concatenate([mean, var], axis=-1).astype(out_ref.dtype)


# ----------------------------------------------------------------------------
# Wrappers
# ----------------------------------------------------------------------------
def _specs():
    smem = pl.BlockSpec(memory_space=pltpu.MemorySpace.SMEM)
    vmem = pl.BlockSpec(memory_space=pltpu.MemorySpace.VMEM)
    return [smem, vmem, vmem, vmem, vmem, vmem], vmem


def mc_dropout_forward(params, x, seed, dropout_rate=DROPOUT_RATE):
    """Equivalent of MonteCarloDropout.forward(x): one pass, dropout active."""
    w1, b1, w2, b2 = params
    B, _ = x.shape
    Dout = w2.shape[1]
    keep_threshold = _threshold(dropout_rate)
    inv_keep = 1.0 / (1.0 - dropout_rate) if dropout_rate < 1.0 else 0.0
    seed_arr = jnp.asarray([seed], dtype=jnp.int32)

    kernel = functools.partial(
        _forward_kernel, keep_threshold=keep_threshold, inv_keep=inv_keep)
    in_specs, out_spec = _specs()

    return pl.pallas_call(
        kernel,
        out_shape=jax.ShapeDtypeStruct((B, Dout), x.dtype),
        in_specs=in_specs,
        out_specs=out_spec,
    )(seed_arr, x, w1, b1, w2, b2)


def mc_predict_with_uncertainty(params, x, seed, n_samples=30,
                                dropout_rate=DROPOUT_RATE):
    """Equivalent of MonteCarloDropout.predict_with_uncertainty(x, n_samples)."""
    assert n_samples >= 2, "need >= 2 samples for an unbiased variance"
    w1, b1, w2, b2 = params
    B, _ = x.shape
    Dout = w2.shape[1]
    keep_threshold = _threshold(dropout_rate)
    inv_keep = 1.0 / (1.0 - dropout_rate) if dropout_rate < 1.0 else 0.0
    seed_arr = jnp.asarray([seed], dtype=jnp.int32)

    kernel = functools.partial(
        _mc_kernel, n_samples=n_samples, batch=B, d_out=Dout,
        keep_threshold=keep_threshold, inv_keep=inv_keep)
    in_specs, out_spec = _specs()

    packed = pl.pallas_call(
        kernel,
        out_shape=jax.ShapeDtypeStruct((B, 2 * Dout), jnp.float32),
        in_specs=in_specs,
        out_specs=out_spec,
    )(seed_arr, x, w1, b1, w2, b2)
    return packed[:, :Dout], packed[:, Dout:]


def init_params(key, d_in, hidden, d_out):
    """Deterministic synthetic parameters for the wrapped MLP."""
    k1, k2, k3, k4 = jax.random.split(key, 4)
    w1 = jax.random.normal(k1, (d_in, hidden), jnp.float32) * 0.1
    b1 = jax.random.normal(k2, (1, hidden), jnp.float32) * 0.01
    w2 = jax.random.normal(k3, (hidden, d_out), jnp.float32) * 0.1
    b2 = jax.random.normal(k4, (1, d_out), jnp.float32) * 0.01
    return (w1, b1, w2, b2)


def _reference_no_dropout(params, x):
    w1, b1, w2, b2 = params
    h = jnp.maximum(jnp.dot(x, w1, precision=lax.Precision.HIGHEST) + b1, 0.0)
    return jnp.dot(h, w2, precision=lax.Precision.HIGHEST) + b2


if __name__ == "__main__":
    B, D_IN, HIDDEN, D_OUT = 8, 32, 128, 32
    N_SAMPLES = 8

    key = jax.random.PRNGKey(0)
    k_x, k_p = jax.random.split(key)
    x = jax.random.normal(k_x, (B, D_IN), jnp.float32)
    params = init_params(k_p, D_IN, HIDDEN, D_OUT)

    # --- deterministic sanity check: dropout_rate = 0 must match plain MLP ---
    ref = _reference_no_dropout(params, x)
    y0 = mc_dropout_forward(params, x, seed=7, dropout_rate=0.0)
    m0, v0 = mc_predict_with_uncertainty(params, x, seed=7, n_samples=2,
                                         dropout_rate=0.0)
    jax.block_until_ready((y0, m0, v0))
    assert jnp.allclose(y0, ref, rtol=1e-3, atol=1e-3)
    assert jnp.allclose(m0, ref, rtol=1e-3, atol=1e-3)
    assert float(jnp.max(jnp.abs(v0))) < 1e-6

    # --- stochastic paths (dropout active, as MonteCarloDropout intends) -----
    y = mc_dropout_forward(params, x, seed=1234)
    mean, var = mc_predict_with_uncertainty(params, x, seed=1234,
                                            n_samples=N_SAMPLES)
    jax.block_until_ready((y, mean, var))

    assert y.shape == (B, D_OUT)
    assert mean.shape == (B, D_OUT) and var.shape == (B, D_OUT)
    assert bool(jnp.all(var >= 0.0))          # squared-deviation form: exact >= 0
    assert float(jnp.max(var)) > 0.0          # dropout really perturbed samples
    # MC mean should sit near the deterministic output (inverted dropout is
    # unbiased); generous tolerance for n=8 sampling noise.
    assert float(jnp.max(jnp.abs(mean - ref))) < 0.5

    print("KERNEL_OK")
</pallas_src>

<mosaic_0001>
module attributes {stable_mosaic.version = 11 : i64} {
  func.func @_forward_kernel(%arg0: memref<1xi32, #tpu.memory_space<smem>>, %arg1: memref<8x32xf32, #tpu.memory_space<vmem>>, %arg2: memref<32x128xf32, #tpu.memory_space<vmem>>, %arg3: memref<1x128xf32, #tpu.memory_space<vmem>>, %arg4: memref<128x32xf32, #tpu.memory_space<vmem>>, %arg5: memref<1x32xf32, #tpu.memory_space<vmem>>, %arg6: memref<8x32xf32, #tpu.memory_space<vmem>>) attributes {dimension_semantics = [], scalar_prefetch = 0 : i64, scratch_operands = 0 : i64, tpu.core_type = #tpu.core_type<tc>} {
    %c0 = arith.constant 0 : index
    %c0_0 = arith.constant 0 : index
    %0 = vector.load %arg1[%c0, %c0_0] : memref<8x32xf32, #tpu.memory_space<vmem>>, vector<8x32xf32>
    %c0_1 = arith.constant 0 : index
    %c0_2 = arith.constant 0 : index
    %1 = vector.load %arg2[%c0_1, %c0_2] : memref<32x128xf32, #tpu.memory_space<vmem>>, vector<32x128xf32>
    %cst = arith.constant dense<0.000000e+00> : vector<8x128xf32>
    %2 = tpu.matmul %0, %1, %cst {dimension_numbers = #tpu.dot_dimension_numbers<[1], [0], [0], [1], [0, 0, 1, 1], [], []>} : vector<8x32xf32>, vector<32x128xf32>, vector<8x128xf32> -> vector<8x128xf32>
    %c0_3 = arith.constant 0 : index
    %c0_4 = arith.constant 0 : index
    %3 = vector.load %arg3[%c0_3, %c0_4] : memref<1x128xf32, #tpu.memory_space<vmem>>, vector<1x128xf32>
    %4 = vector.broadcast %3 : vector<1x128xf32> to vector<8x128xf32>
    %5 = arith.addf %2, %4 : vector<8x128xf32>
    %cst_5 = arith.constant 0.000000e+00 : f32
    %6 = vector.broadcast %cst_5 : f32 to vector<8x128xf32>
    %7 = arith.maximumf %5, %6 : vector<8x128xf32>
    %c0_6 = arith.constant 0 : index
    %8 = memref.load %arg0[%c0_6] : memref<1xi32, #tpu.memory_space<smem>>
    %9 = tpu.iota {dimensions = array<i32: 0>} : vector<8x128xi32>
    %10 = tpu.iota {dimensions = array<i32: 1>} : vector<8x128xi32>
    %c128_i32 = arith.constant 128 : i32
    %11 = vector.broadcast %c128_i32 : i32 to vector<8x128xi32>
    %12 = arith.muli %9, %11 : vector<8x128xi32>
    %13 = arith.addi %12, %10 : vector<8x128xi32>
    %c-1640531535_i32 = arith.constant -1640531535 : i32
    %14 = arith.muli %8, %c-1640531535_i32 : i32
    %15 = vector.broadcast %14 : i32 to vector<8x128xi32>
    %16 = arith.addi %13, %15 : vector<8x128xi32>
    %c0_i32 = arith.constant 0 : i32
    %17 = vector.broadcast %c0_i32 : i32 to vector<8x128xi32>
    %18 = arith.addi %16, %17 : vector<8x128xi32>
    %c16_i32 = arith.constant 16 : i32
    %19 = vector.broadcast %c16_i32 : i32 to vector<8x128xi32>
    %20 = arith.shrui %18, %19 : vector<8x128xi32>
    %21 = arith.xori %18, %20 : vector<8x128xi32>
    %c2146121005_i32 = arith.constant 2146121005 : i32
    %22 = vector.broadcast %c2146121005_i32 : i32 to vector<8x128xi32>
    %23 = arith.muli %21, %22 : vector<8x128xi32>
    %c15_i32 = arith.constant 15 : i32
    %24 = vector.broadcast %c15_i32 : i32 to vector<8x128xi32>
    %25 = arith.shrui %23, %24 : vector<8x128xi32>
    %26 = arith.xori %23, %25 : vector<8x128xi32>
    %c-2073254261_i32 = arith.constant -2073254261 : i32
    %27 = vector.broadcast %c-2073254261_i32 : i32 to vector<8x128xi32>
    %28 = arith.muli %26, %27 : vector<8x128xi32>
    %c16_i32_7 = arith.constant 16 : i32
    %29 = vector.broadcast %c16_i32_7 : i32 to vector<8x128xi32>
    %30 = arith.shrui %28, %29 : vector<8x128xi32>
    %31 = arith.xori %28, %30 : vector<8x128xi32>
    %c0_i32_8 = arith.constant 0 : i32
    %32 = vector.broadcast %c0_i32_8 : i32 to vector<8x128xi32>
    %33 = arith.cmpi uge, %31, %32 : vector<8x128xi32>
    %cst_9 = arith.constant 1.000000e+00 : f32
    %34 = vector.broadcast %cst_9 : f32 to vector<8x128xf32>
    %35 = arith.mulf %7, %34 : vector<8x128xf32>
    %cst_10 = arith.constant 0.000000e+00 : f32
    %36 = vector.broadcast %cst_10 : f32 to vector<8x128xf32>
    %37 = arith.select %33, %35, %36 : vector<8x128xi1>, vector<8x128xf32>
    %c0_11 = arith.constant 0 : index
    %c0_12 = arith.constant 0 : index
    %38 = vector.load %arg4[%c0_11, %c0_12] : memref<128x32xf32, #tpu.memory_space<vmem>>, vector<128x32xf32>
    %cst_13 = arith.constant dense<0.000000e+00> : vector<8x32xf32>
    %39 = tpu.matmul %37, %38, %cst_13 {dimension_numbers = #tpu.dot_dimension_numbers<[1], [0], [0], [1], [0, 0, 1, 1], [], []>} : vector<8x128xf32>, vector<128x32xf32>, vector<8x32xf32> -> vector<8x32xf32>
    %c0_14 = arith.constant 0 : index
    %c0_15 = arith.constant 0 : index
    %40 = vector.load %arg5[%c0_14, %c0_15] : memref<1x32xf32, #tpu.memory_space<vmem>>, vector<1x32xf32>
    %41 = vector.broadcast %40 : vector<1x32xf32> to vector<8x32xf32>
    %42 = arith.addf %39, %41 : vector<8x32xf32>
    %c0_16 = arith.constant 0 : index
    %c0_17 = arith.constant 0 : index
    %43 = vector.load %arg6[%c0_16, %c0_17] : memref<8x32xf32, #tpu.memory_space<vmem>>, vector<8x32xf32>
    tpu.vector_store %arg6[%c0_16, %c0_17], %42 {strides = array<i32>} : memref<8x32xf32, #tpu.memory_space<vmem>>, vector<8x32xf32>,
    return
  }
}

</mosaic_0001>

<llo_original>
// kernel: tpu_custom_call.1
$region0: #{tpu_custom_call.1}
  #allocation0 [shape = 'u32[]', space=smem, size = 0x4, offset = 0x4, fixed_abs, tag = 'smem constant byte address 0x4 - core index']
  #allocation1 [shape = 'u32[144,128]{1,0:T(1,128)}', space=vmem, size = 0x12000, scoped, tag = 'internal scratch']
  #allocation2 [shape = 's32[1]{0:T(128)S(6)}', space=smem, size = 0x200, scoped, tag = 'scoped memory for tpu_custom_call.1']
  %s0 = inlined_call_operand.<no memory space> [shape: s32[1], index: 0, kind: input, shape index: {}]
  %s1 = inlined_call_operand.vmem [shape: f32[8,32], index: 1, kind: input, shape index: {}]
  %s2 = inlined_call_operand.vmem [shape: f32[32,128], index: 2, kind: input, shape index: {}]
  %s3 = inlined_call_operand.vmem [shape: f32[1,128], index: 3, kind: input, shape index: {}]
  %s4 = inlined_call_operand.vmem [shape: f32[128,32], index: 4, kind: input, shape index: {}]
  %s5 = inlined_call_operand.vmem [shape: f32[1,32], index: 5, kind: input, shape index: {}]
  %s6 = inlined_call_operand.hbm [shape: f32[8,32], index: 6, kind: output, shape index: {}]
  %s7 = sld [smem:[#allocation0]]
  $region34: #{tpu_custom_call.1} parent=0
    _
  %s9 = ssub.s32 1, %s7
  %s10 = scalar_select 0, %s9, %s7
  %11 = sst [smem:[#allocation2]] %s0
  $region1: #{tpu_custom_call.1} parent=0
    #allocation3 [shape = 'u8[4096]{0}', space=vmem, size = 0x1000, scoped, tag = 'output window, operand 0, single buffered']
    #allocation4 [shape = 's32[1]{0}', space=sflag, size = 0x4, scoped, tag = 'scoped memory for tpu_custom_call.1']
    %12 = vsyncpa [#allocation4], 0
    // Predicated region
    $region2: #{tpu_custom_call.1} parent=1 // pred_check
      _
    $region3: #{tpu_custom_call.1} parent=1 // pred_check_branch
      %14 = sbr.rel (0) target = $region5
    $region4: #{tpu_custom_call.1} parent=1 // pred_region
      _
    $region5: #{tpu_custom_call.1} parent=1 // pred_fallthru
      _
    // Predicated region
    $region6: #{tpu_custom_call.1} parent=1 // pred_check
      _
    $region7: #{tpu_custom_call.1} parent=1 // pred_check_branch
      %16 = sbr.rel (0) target = $region9
    $region8: #{tpu_custom_call.1} parent=1 // pred_region
      _
    $region9: #{tpu_custom_call.1} parent=1 // pred_fallthru
      _
    // Predicated region
    $region10: #{tpu_custom_call.1} parent=1 // pred_check
      _
    $region11: #{tpu_custom_call.1} parent=1 // pred_check_branch
      %18 = sbr.rel (0) target = $region13
    $region12: #{tpu_custom_call.1} parent=1 // pred_region
      _
    $region13: #{tpu_custom_call.1} parent=1 // pred_fallthru
      _
    // Predicated region
    $region14: #{tpu_custom_call.1} parent=1 // pred_check
      _
    $region15: #{tpu_custom_call.1} parent=1 // pred_check_branch
      %20 = sbr.rel (0) target = $region17
    $region16: #{tpu_custom_call.1} parent=1 // pred_region
      _
    $region17: #{tpu_custom_call.1} parent=1 // pred_fallthru
      _
    // Predicated region
    $region18: #{tpu_custom_call.1} parent=1 // pred_check
      _
    $region19: #{tpu_custom_call.1} parent=1 // pred_check_branch
      %22 = sbr.rel (0) target = $region21
    $region20: #{tpu_custom_call.1} parent=1 // pred_region
      _
    $region21: #{tpu_custom_call.1} parent=1 // pred_fallthru
      _
    // Predicated region
    $region22: #{tpu_custom_call.1} parent=1 // pred_check
      _
    $region23: #{tpu_custom_call.1} parent=1 // pred_check_branch
      %24 = sbr.rel (0) target = $region25
    $region24: #{tpu_custom_call.1} parent=1 // pred_region
      _
    $region25: #{tpu_custom_call.1} parent=1 // pred_fallthru
      _
    %v25 = vld [vmem:[%s1] sm:$0xff]
    %v26 = vld [vmem:[%s2] sm:$0xff]
    %v27 = vld [vmem:[%s2 + $0x8] sm:$0xff]
    %v28 = vld [vmem:[%s2 + $0x10] sm:$0xff]
    %v29 = vld [vmem:[%s2 + $0x18] sm:$0xff]
    %v30 = vld [vmem:[%s3] sm:$0x1]
    %v32 = vlaneseq
    %v33 = vshrl.u32 %v32, 7
    %v34 = vsub.s32 0, %v33
    %v35 = vrot.slane %v30, %v34
    %vm37 = vcmask 261120
    %v39 = vsel %vm37, %v25, 0
    %41 = vmatprep.subr.mxu0 0.0
    %42 = vmatpush1.msra.mxu0 0.0
    %43 = vmatprep.subr.mxu0 0.0
    %44 = vmatpush1.msra.mxu0 0.0
    %45 = vmatprep.subr.mxu0 0.0
    %46 = vmatpush1.msra.mxu0 0.0
    %47 = vmatprep.subr.mxu0 0.0
    %48 = vmatpush1.msra.mxu0 0.0
    %49 = vmatprep.subr.mxu0 0.0
    %50 = vmatpush1.msra.mxu0 0.0
    %51 = vmatprep.subr.mxu0 0.0
    %52 = vmatpush1.msra.mxu0 0.0
    %53 = vmatprep.subr.mxu0 0.0
    %54 = vmatpush1.msra.mxu0 0.0
    %55 = vmatprep.subr.mxu0 0.0
    %56 = vmatpush1.msra.mxu0 0.0
    %57 = vmatprep.subr.mxu0 0.0
    %58 = vmatpush1.msra.mxu0 0.0
    %59 = vmatprep.subr.mxu0 0.0
    %60 = vmatpush1.msra.mxu0 0.0
    %61 = vmatprep.subr.mxu0 0.0
    %62 = vmatpush1.msra.mxu0 0.0
    %63 = vmatprep.subr.mxu0 0.0
    %64 = vmatpush1.msra.mxu0 0.0
    %65 = vmatprep.subr.mxu0 0.0
    %66 = vmatpush1.msra.mxu0 %v29
    %67 = vmatprep.subr.mxu0 0.0
    %68 = vmatpush1.msra.mxu0 %v28
    %69 = vmatprep.subr.mxu0 0.0
    %70 = vmatpush1.msra.mxu0 %v27
    %71 = vmatprep.subr.mxu0 0.0
    %72 = vmatpush1.msra.mxu0 %v26
    %73 = vmatprep.subr.mxu0 0.0
    %74 = vmatpush2.msra.mxu0 0.0
    %75 = vmatprep.subr.mxu0 0.0
    %76 = vmatpush2.msra.mxu0 0.0
    %77 = vmatprep.subr.mxu0 0.0
    %78 = vmatpush2.msra.mxu0 0.0
    %79 = vmatprep.subr.mxu0 0.0
    %80 = vmatpush2.msra.mxu0 0.0
    %81 = vmatprep.subr.mxu0 0.0
    %82 = vmatpush2.msra.mxu0 0.0
    %83 = vmatprep.subr.mxu0 0.0
    %84 = vmatpush2.msra.mxu0 0.0
    %85 = vmatprep.subr.mxu0 0.0
    %86 = vmatpush2.msra.mxu0 0.0
    %87 = vmatprep.subr.mxu0 0.0
    %88 = vmatpush2.msra.mxu0 0.0
    %89 = vmatprep.subr.mxu0 0.0
    %90 = vmatpush2.msra.mxu0 0.0
    %91 = vmatprep.subr.mxu0 0.0
    %92 = vmatpush2.msra.mxu0 0.0
    %93 = vmatprep.subr.mxu0 0.0
    %94 = vmatpush2.msra.mxu0 0.0
    %95 = vmatprep.subr.mxu0 0.0
    %96 = vmatpush2.msra.mxu0 0.0
    %97 = vmatprep.subr.mxu0 0.0
    %98 = vmatpush2.msra.mxu0 0.0
    %99 = vmatprep.subr.mxu0 0.0
    %100 = vmatpush2.msra.mxu0 0.0
    %101 = vmatprep.subr.mxu0 0.0
    %102 = vmatpush2.msra.mxu0 0.0
    %103 = vmatprep.subr.mxu0 0.0
    %104 = vmatpush2.msra.mxu0 0.0
    %105 = vmatprep.mubr.f32.mxu0 0.0
    %106 = vmatmul.mubr.f32.gmra.mxu0 %v39
    %v107 = vpop.f32.mrf.mxu0
    %v108 = vadd.f32 %v35, %v107
    %v109 = vpop.f32.mrf.mxu0
    %110 = vdwg.mxu0
    %v111 = vmax.f32 %v108, 0.0
    %s112 = sld [smem:[#allocation2]]
    %v113 = vlaneseq
    %v114 = vshrl.u32 %v113, 7
    %v115 = vlaneseq
    %v116 = vand.u32 %v115, 127
    %v117 = vmul.u32 %v114, 128
    %v118 = vadd.s32 %v117, %v116
    %s119 = smul.u32 %s112, 2654435761
    %v120 = vstv %s119
    %v121 = vadd.s32 %v118, %v120
    %v122 = vshrl.u32 %v121, 16
    %v123 = vxor.u32 %v121, %v122
    %v124 = vmul.u32 %v123, 2146121005
    %v125 = vshrl.u32 %v124, 15
    %v126 = vxor.u32 %v124, %v125
    %v127 = vmul.u32 %v126, 2221713035
    %v128 = vshrl.u32 %v127, 16
    %v129 = vxor.u32 %v127, %v128
    %vm130 = vcmp.ge.u32.totalorder %v129, 0
    %v131 = vsel %vm130, %v111, 0.0
    %v132 = vld [vmem:[%s4] sm:$0xff]
    %v133 = vld [vmem:[%s4 + $0x8] sm:$0xff]
    %v134 = vld [vmem:[%s4 + $0x10] sm:$0xff]
    %v135 = vld [vmem:[%s4 + $0x18] sm:$0xff]
    %v136 = vld [vmem:[%s4 + $0x20] sm:$0xff]
    %v137 = vld [vmem:[%s4 + $0x28] sm:$0xff]
    %v138 = vld [vmem:[%s4 + $0x30] sm:$0xff]
    %v139 = vld [vmem:[%s4 + $0x38] sm:$0xff]
    %v140 = vld [vmem:[%s4 + $0x40] sm:$0xff]
    %v141 = vld [vmem:[%s4 + $0x48] sm:$0xff]
    %v142 = vld [vmem:[%s4 + $0x50] sm:$0xff]
    %v143 = vld [vmem:[%s4 + $0x58] sm:$0xff]
    %v144 = vld [vmem:[%s4 + $0x60] sm:$0xff]
    %v145 = vld [vmem:[%s4 + $0x68] sm:$0xff]
    %v146 = vld [vmem:[%s4 + $0x70] sm:$0xff]
    %v147 = vld [vmem:[%s4 + $0x78] sm:$0xff]
    %v148 = vld [vmem:[%s5] sm:$0x1]
    %v150 = vlaneseq
    %v151 = vshrl.u32 %v150, 7
    %v152 = vsub.s32 0, %v151
    %v153 = vrot.slane %v148, %v152
    %155 = vmatprep.subr.mxu0 0.0
    %156 = vmatpush1.msra.mxu0 %v147
    %157 = vmatprep.subr.mxu0 0.0
    %158 = vmatpush1.msra.mxu0 %v146
    %159 = vmatprep.subr.mxu0 0.0
    %160 = vmatpush1.msra.mxu0 %v145
    %161 = vmatprep.subr.mxu0 0.0
    %162 = vmatpush1.msra.mxu0 %v144
    %163 = vmatprep.subr.mxu0 0.0
    %164 = vmatpush1.msra.mxu0 %v143
    %165 = vmatprep.subr.mxu0 0.0
    %166 = vmatpush1.msra.mxu0 %v142
    %167 = vmatprep.subr.mxu0 0.0
    %168 = vmatpush1.msra.mxu0 %v141
    %169 = vmatprep.subr.mxu0 0.0
    %170 = vmatpush1.msra.mxu0 %v140
    %171 = vmatprep.subr.mxu0 0.0
    %172 = vmatpush1.msra.mxu0 %v139
    %173 = vmatprep.subr.mxu0 0.0
    %174 = vmatpush1.msra.mxu0 %v138
    %175 = vmatprep.subr.mxu0 0.0
    %176 = vmatpush1.msra.mxu0 %v137
    %177 = vmatprep.subr.mxu0 0.0
    %178 = vmatpush1.msra.mxu0 %v136
    %179 = vmatprep.subr.mxu0 0.0
    %180 = vmatpush1.msra.mxu0 %v135
    %181 = vmatprep.subr.mxu0 0.0
    %182 = vmatpush1.msra.mxu0 %v134
    %183 = vmatprep.subr.mxu0 0.0
    %184 = vmatpush1.msra.mxu0 %v133
    %185 = vmatprep.subr.mxu0 0.0
    %186 = vmatpush1.msra.mxu0 %v132
    %187 = vmatprep.subr.mxu0 0.0
    %188 = vmatpush2.msra.mxu0 0.0
    %189 = vmatprep.subr.mxu0 0.0
    %190 = vmatpush2.msra.mxu0 0.0
    %191 = vmatprep.subr.mxu0 0.0
    %192 = vmatpush2.msra.mxu0 0.0
    %193 = vmatprep.subr.mxu0 0.0
    %194 = vmatpush2.msra.mxu0 0.0
    %195 = vmatprep.subr.mxu0 0.0
    %196 = vmatpush2.msra.mxu0 0.0
    %197 = vmatprep.subr.mxu0 0.0
    %198 = vmatpush2.msra.mxu0 0.0
    %199 = vmatprep.subr.mxu0 0.0
    %200 = vmatpush2.msra.mxu0 0.0
    %201 = vmatprep.subr.mxu0 0.0
    %202 = vmatpush2.msra.mxu0 0.0
    %203 = vmatprep.subr.mxu0 0.0
    %204 = vmatpush2.msra.mxu0 0.0
    %205 = vmatprep.subr.mxu0 0.0
    %206 = vmatpush2.msra.mxu0 0.0
    %207 = vmatprep.subr.mxu0 0.0
    %208 = vmatpush2.msra.mxu0 0.0
    %209 = vmatprep.subr.mxu0 0.0
    %210 = vmatpush2.msra.mxu0 0.0
    %211 = vmatprep.subr.mxu0 0.0
    %212 = vmatpush2.msra.mxu0 0.0
    %213 = vmatprep.subr.mxu0 0.0
    %214 = vmatpush2.msra.mxu0 0.0
    %215 = vmatprep.subr.mxu0 0.0
    %216 = vmatpush2.msra.mxu0 0.0
    %217 = vmatprep.subr.mxu0 0.0
    %218 = vmatpush2.msra.mxu0 0.0
    %219 = vmatprep.mubr.f32.mxu0 0.0
    %220 = vmatmul.mubr.f32.gmra.mxu0 %v131
    %v221 = vpop.f32.mrf.mxu0
    %v222 = vadd.f32 %v153, %v221
    %v223 = vpop.f32.mrf.mxu0
    %224 = vdwg.mxu0
    %225 = vst.msk [vmem:[#allocation3] sm:$0xff] %vm37, %v222
    // Predicated region
    $region26: #{tpu_custom_call.1} parent=1 // pred_check
      _
    $region27: #{tpu_custom_call.1} parent=1 // pred_check_branch
      %227 = sbr.rel (0) target = $region29
    $region28: #{tpu_custom_call.1} parent=1 // pred_region
      %s229 = ssub.s32 128, 128
      %230 = vsyncadd [#allocation4], %s229
      %s232 = sshll.u32 [#allocation3], 4
      %s233 = int_to_ptr.vmem [resolvable:$true] %s232
      %235 = dma.vmem_to_hbm [thread:$0]  %s233, 128, %s6, [#allocation4]
    $region29: #{tpu_custom_call.1} parent=1 // pred_fallthru
      _
    // Predicated region
    $region30: #{tpu_custom_call.1} parent=1 // pred_check
      _
    $region31: #{tpu_custom_call.1} parent=1 // pred_check_branch
      %237 = sbr.rel (0) target = $region33
    $region32: #{tpu_custom_call.1} parent=1 // pred_region
      %238 = dma.done [#allocation4], 128
    $region33: #{tpu_custom_call.1} parent=1 // pred_fallthru
      _
    %239 = vsyncpa [#allocation4], 1

</llo_original>
